<compile_context>
chip_gen: v5e
topology: v5e:2x2
jax: 0.10.0
libtpu: 0.0.40
codegen_flags: <defaults>
</compile_context>

<pallas_src>
import jax
import jax.numpy as jnp
import numpy as np
from jax.experimental import pallas as pl
from jax.experimental.pallas import tpu as pltpu  # noqa: F401  (TPU backend)

# ----- model configuration (small, consistent with module semantics) -----
DIM1, DIM2 = 8, 8            # in_dim = (dim_1, dim_2); packing assumes dim_1 == dim_2
D = DIM1 + DIM2
HIDDEN = 32                  # hidden_dim
H2 = 2 * HIDDEN              # fused (t|s) hidden width
N_LAYERS = 2                 # n_layers
N_FUSED = 2 * N_LAYERS       # fused t/s nets: index = 2*layer + {0: (t1,s1), 1: (t2,s2)}
BATCH = 16
LD_LANES = 128               # merged lane-dense output width

# ----- packed-weight layout (per fused t|s net, 8-row-aligned offsets) -----
PACK_LANES = 256             # lane width of the packed buffer (W3/b3 use all 256)
W1_OFF = 0                   # rows 0..7      : fused W1 (in_dim, 2H) at cols 0..2H-1
B1_OFF = 8                   # row  8         : fused b1 at cols 0..2H-1
W2_OFF = 16                  # rows 16..79    : block-diag W2 (2H, 2H) at cols 0..2H-1
B2_OFF = 80                  # row  80        : fused b2 at cols 0..2H-1
W3_OFF = 88                  # rows 88..151   : padded W3 (2H, 256): t @ cols 0..out-1,
                             #                  s @ cols 128..128+out-1, s-colsum @ col 128+out
B3_OFF = 152                 # row  152       : padded b3 (1, 256), same lane layout
NET_ROWS = 160               # rows per fused net (multiple of 8)


# ------------------------- Pallas kernel -------------------------
def realnvp_fused_kernel(x_ref, w_ref, out_ref):
    """All RealNVP layers fused in one grid-less call.

    x_ref   : (2, B, DIM1)            -- [0] = lower, [1] = upper (lane offset 0)
    w_ref   : (N_FUSED, 160, 256)     -- packed weights, static 8-row-aligned slices
    out_ref : (B, 128)                -- lanes 0..7 lower | 8..15 upper | 16.. log_det
    """
    B = x_ref.shape[1]
    lower = x_ref[0]                              # (B, DIM1)
    upper = x_ref[1]                              # (B, DIM2)
    log_det = jnp.zeros((B, 1), jnp.float32)

    def fused_ts(h, net, out_dim):
        # Fused t/s DenseNet: W1 = [Wt1 | Ws1], W2 block-diagonal,
        # W3 padded to 256 lanes with s block at lane 128 and a folded
        # sum(s)-column at lane 128 + out_dim.
        in_dim = h.shape[1]
        w1 = w_ref[net, W1_OFF:W1_OFF + in_dim, :H2]
        b1 = w_ref[net, B1_OFF:B1_OFF + 1, :H2]
        w2 = w_ref[net, W2_OFF:W2_OFF + H2, :H2]
        b2 = w_ref[net, B2_OFF:B2_OFF + 1, :H2]
        w3 = w_ref[net, W3_OFF:W3_OFF + H2, :]
        b3 = w_ref[net, B3_OFF:B3_OFF + 1, :]

        h1 = jnp.tanh(jnp.dot(h, w1, preferred_element_type=jnp.float32) + b1)
        h2 = jnp.tanh(jnp.dot(h1, w2, preferred_element_type=jnp.float32) + b2)
        o = jnp.dot(h2, w3, preferred_element_type=jnp.float32) + b3
        t = o[:, :out_dim]                         # lanes 0..out_dim-1
        s = o[:, 128:128 + out_dim]                # vreg-aligned s block
        ssum = o[:, 128 + out_dim:128 + out_dim + 1]   # folded sum(s, axis=-1)
        return t, s, ssum

    for l in range(N_LAYERS):                      # static unroll (N_LAYERS small)
        t1, s1, ssum1 = fused_ts(lower, 2 * l + 0, DIM2)
        upper = t1 + upper * jnp.exp(s1)
        t2, s2, ssum2 = fused_ts(upper, 2 * l + 1, DIM1)
        lower = t2 + lower * jnp.exp(s2)
        log_det = log_det + ssum1 + ssum2

    # Compose the full 128-lane row in-register; one unmasked store.
    row = jnp.concatenate(
        [lower, upper, jnp.broadcast_to(log_det, (B, LD_LANES - DIM1 - DIM2))],
        axis=-1)
    out_ref[...] = row


def realnvp_forward(x, packed_w):
    """RealNVP.forward: one fused pallas_call. Returns (z [B,D], log_det [B])."""
    B = x.shape[0]
    # Wrapper-side layout plumbing (assumes dim_1 == dim_2): (B, D) -> (2, B, DIM1)
    x_split = jnp.transpose(x.reshape(B, 2, DIM1), (1, 0, 2))

    flops = 2 * N_FUSED * B * (DIM1 * H2 + H2 * H2 + H2 * PACK_LANES)
    transcend = N_FUSED * 2 * B * H2 + N_LAYERS * 2 * B * DIM1
    bytes_acc = 4 * (x_split.size + packed_w.size + B * LD_LANES)

    out = pl.pallas_call(
        realnvp_fused_kernel,
        out_shape=jax.ShapeDtypeStruct((B, LD_LANES), jnp.float32),
        cost_estimate=pl.CostEstimate(flops=int(flops),
                                      transcendentals=int(transcend),
                                      bytes_accessed=int(bytes_acc)),
    )(x_split, packed_w)
    return out[:, :D], out[:, D]


# ------------------------- host-side weight packing -------------------------
def pack_params(params):
    """Pack per-layer {t1,s1,t2,s2} DenseNet params into ONE (N_FUSED,160,256) buffer.

    Fused-net index = 2*layer + {0: fused(t1,s1), 1: fused(t2,s2)}.
    Assumes dim_1 == dim_2 (true for this config).
    """
    nets = []
    for lp in params:
        nets.append((lp["t1"], lp["s1"]))
        nets.append((lp["t2"], lp["s2"]))

    buf = np.zeros((len(nets), NET_ROWS, PACK_LANES), np.float32)
    for i, (tnet, snet) in enumerate(nets):
        tw1, tb1, tw2, tb2, tw3, tb3 = (np.asarray(a, np.float32) for a in tnet)
        sw1, sb1, sw2, sb2, sw3, sb3 = (np.asarray(a, np.float32) for a in snet)
        in_dim, hid = tw1.shape
        out_dim = tw3.shape[1]
        assert 2 * hid == H2 and in_dim <= 8 and out_dim <= DIM1

        # W1 fused [t | s]
        buf[i, W1_OFF:W1_OFF + in_dim, 0:hid] = tw1
        buf[i, W1_OFF:W1_OFF + in_dim, hid:2 * hid] = sw1
        buf[i, B1_OFF, 0:hid] = tb1[0]
        buf[i, B1_OFF, hid:2 * hid] = sb1[0]
        # W2 block-diagonal
        buf[i, W2_OFF:W2_OFF + hid, 0:hid] = tw2
        buf[i, W2_OFF + hid:W2_OFF + 2 * hid, hid:2 * hid] = sw2
        buf[i, B2_OFF, 0:hid] = tb2[0]
        buf[i, B2_OFF, hid:2 * hid] = sb2[0]
        # W3 padded to 256 lanes: t @ 0..out-1, s @ 128..128+out-1, folded sum @ 128+out
        buf[i, W3_OFF:W3_OFF + hid, 0:out_dim] = tw3
        buf[i, W3_OFF + hid:W3_OFF + 2 * hid, 128:128 + out_dim] = sw3
        buf[i, W3_OFF + hid:W3_OFF + 2 * hid, 128 + out_dim] = sw3.sum(axis=1)
        buf[i, B3_OFF, 0:out_dim] = tb3[0]
        buf[i, B3_OFF, 128:128 + out_dim] = sb3[0]
        buf[i, B3_OFF, 128 + out_dim] = sb3[0].sum()
    return jnp.asarray(buf)


# ------------------------- parameter init (deterministic) -------------------------
def init_dense(key, in_dim, out_dim, hidden):
    ks = jax.random.split(key, 6)
    s = 0.1
    return (jax.random.normal(ks[0], (in_dim, hidden), jnp.float32) * s,
            jax.random.normal(ks[1], (1, hidden), jnp.float32) * s,
            jax.random.normal(ks[2], (hidden, hidden), jnp.float32) * s,
            jax.random.normal(ks[3], (1, hidden), jnp.float32) * s,
            jax.random.normal(ks[4], (hidden, out_dim), jnp.float32) * s,
            jax.random.normal(ks[5], (1, out_dim), jnp.float32) * s)


def init_realnvp_params(key, in_dim, hidden, n_layers):
    d1, d2 = in_dim
    params = []
    for li in range(n_layers):
        kt1, ks1, kt2, ks2 = jax.random.split(jax.random.fold_in(key, li), 4)
        params.append({
            "t1": init_dense(kt1, d1, d2, hidden),
            "s1": init_dense(ks1, d1, d2, hidden),
            "t2": init_dense(kt2, d2, d1, hidden),
            "s2": init_dense(ks2, d2, d1, hidden),
        })
    return params


# ------------------------- pure-JAX reference (unfused) -------------------------
def _dense_ref(h, p):
    w1, b1, w2, b2, w3, b3 = p
    h = jnp.tanh(h @ w1 + b1)
    h = jnp.tanh(h @ w2 + b2)
    return h @ w3 + b3


def realnvp_forward_ref(x, params):
    log_det = jnp.zeros((x.shape[0],), jnp.float32)
    for lp in params:
        lower, upper = x[:, :DIM1], x[:, DIM1:]
        t1 = _dense_ref(lower, lp["t1"])
        s1 = _dense_ref(lower, lp["s1"])
        upper = t1 + upper * jnp.exp(s1)
        t2 = _dense_ref(upper, lp["t2"])
        s2 = _dense_ref(upper, lp["s2"])
        lower = t2 + lower * jnp.exp(s2)
        x = jnp.concatenate([lower, upper], axis=-1)
        log_det = log_det + jnp.sum(s1, axis=-1) + jnp.sum(s2, axis=-1)
    return x, log_det


# ------------------------- main -------------------------
if __name__ == "__main__":
    key = jax.random.PRNGKey(0)
    kx, kp = jax.random.split(key)
    x = jax.random.normal(kx, (BATCH, D), jnp.float32)
    params = init_realnvp_params(kp, (DIM1, DIM2), HIDDEN, N_LAYERS)
    packed = pack_params(params)

    z, log_det = realnvp_forward(x, packed)
    jax.block_until_ready((z, log_det))

    z_ref, ld_ref = realnvp_forward_ref(x, params)
    assert z.shape == (BATCH, D) and log_det.shape == (BATCH,)
    assert jnp.allclose(z, z_ref, atol=1e-5, rtol=1e-5)
    assert jnp.allclose(log_det, ld_ref, atol=1e-5, rtol=1e-5)
    # TODO(synk): RealNVP.inverse (base->target) not implemented; only forward was required.
    print("KERNEL_OK")
</pallas_src>

<mosaic_0001>
module attributes {stable_mosaic.version = 11 : i64} {
  func.func @realnvp_fused_kernel(%arg0: memref<2x16x8xf32, #tpu.memory_space<vmem>>, %arg1: memref<4x160x256xf32, #tpu.memory_space<vmem>>, %arg2: memref<16x128xf32, #tpu.memory_space<vmem>>) attributes {dimension_semantics = [], scalar_prefetch = 0 : i64, scratch_operands = 0 : i64, tpu.core_type = #tpu.core_type<tc>} {
    %c0 = arith.constant 0 : index
    %c0_0 = arith.constant 0 : index
    %c0_1 = arith.constant 0 : index
    %0 = vector.load %arg0[%c0, %c0_0, %c0_1] : memref<2x16x8xf32, #tpu.memory_space<vmem>>, vector<1x16x8xf32>
    %1 = vector.shape_cast %0 : vector<1x16x8xf32> to vector<16x8xf32>
    %c1 = arith.constant 1 : index
    %c0_2 = arith.constant 0 : index
    %c0_3 = arith.constant 0 : index
    %2 = vector.load %arg0[%c1, %c0_2, %c0_3] : memref<2x16x8xf32, #tpu.memory_space<vmem>>, vector<1x16x8xf32>
    %3 = vector.shape_cast %2 : vector<1x16x8xf32> to vector<16x8xf32>
    %cst = arith.constant 0.000000e+00 : f32
    %4 = vector.broadcast %cst : f32 to vector<16x1xf32>
    %c0_4 = arith.constant 0 : index
    %c0_5 = arith.constant 0 : index
    %c0_6 = arith.constant 0 : index
    %5 = vector.load %arg1[%c0_4, %c0_5, %c0_6] : memref<4x160x256xf32, #tpu.memory_space<vmem>>, vector<1x8x64xf32>
    %6 = vector.shape_cast %5 : vector<1x8x64xf32> to vector<8x64xf32>
    %c0_7 = arith.constant 0 : index
    %c8 = arith.constant 8 : index
    %c0_8 = arith.constant 0 : index
    %7 = vector.load %arg1[%c0_7, %c8, %c0_8] : memref<4x160x256xf32, #tpu.memory_space<vmem>>, vector<1x1x64xf32>
    %8 = vector.shape_cast %7 : vector<1x1x64xf32> to vector<1x64xf32>
    %c0_9 = arith.constant 0 : index
    %c16 = arith.constant 16 : index
    %c0_10 = arith.constant 0 : index
    %9 = vector.load %arg1[%c0_9, %c16, %c0_10] : memref<4x160x256xf32, #tpu.memory_space<vmem>>, vector<1x64x64xf32>
    %10 = vector.shape_cast %9 : vector<1x64x64xf32> to vector<64x64xf32>
    %c0_11 = arith.constant 0 : index
    %c80 = arith.constant 80 : index
    %c0_12 = arith.constant 0 : index
    %11 = vector.load %arg1[%c0_11, %c80, %c0_12] : memref<4x160x256xf32, #tpu.memory_space<vmem>>, vector<1x1x64xf32>
    %12 = vector.shape_cast %11 : vector<1x1x64xf32> to vector<1x64xf32>
    %c0_13 = arith.constant 0 : index
    %c88 = arith.constant 88 : index
    %c0_14 = arith.constant 0 : index
    %13 = vector.load %arg1[%c0_13, %c88, %c0_14] : memref<4x160x256xf32, #tpu.memory_space<vmem>>, vector<1x64x256xf32>
    %14 = vector.shape_cast %13 : vector<1x64x256xf32> to vector<64x256xf32>
    %c0_15 = arith.constant 0 : index
    %c152 = arith.constant 152 : index
    %c0_16 = arith.constant 0 : index
    %15 = vector.load %arg1[%c0_15, %c152, %c0_16] : memref<4x160x256xf32, #tpu.memory_space<vmem>>, vector<1x1x256xf32>
    %16 = vector.shape_cast %15 : vector<1x1x256xf32> to vector<1x256xf32>
    %cst_17 = arith.constant dense<0.000000e+00> : vector<16x64xf32>
    %17 = tpu.matmul %1, %6, %cst_17 {dimension_numbers = #tpu.dot_dimension_numbers<[1], [0], [0], [1], [0, 0, 1, 1], [], []>} : vector<16x8xf32>, vector<8x64xf32>, vector<16x64xf32> -> vector<16x64xf32>
    %18 = vector.broadcast %8 : vector<1x64xf32> to vector<16x64xf32>
    %19 = arith.addf %17, %18 : vector<16x64xf32>
    %20 = math.tanh %19 : vector<16x64xf32>
    %cst_18 = arith.constant dense<0.000000e+00> : vector<16x64xf32>
    %21 = tpu.matmul %20, %10, %cst_18 {dimension_numbers = #tpu.dot_dimension_numbers<[1], [0], [0], [1], [0, 0, 1, 1], [], []>} : vector<16x64xf32>, vector<64x64xf32>, vector<16x64xf32> -> vector<16x64xf32>
    %22 = vector.broadcast %12 : vector<1x64xf32> to vector<16x64xf32>
    %23 = arith.addf %21, %22 : vector<16x64xf32>
    %24 = math.tanh %23 : vector<16x64xf32>
    %cst_19 = arith.constant dense<0.000000e+00> : vector<16x256xf32>
    %25 = tpu.matmul %24, %14, %cst_19 {dimension_numbers = #tpu.dot_dimension_numbers<[1], [0], [0], [1], [0, 0, 1, 1], [], []>} : vector<16x64xf32>, vector<64x256xf32>, vector<16x256xf32> -> vector<16x256xf32>
    %26 = vector.broadcast %16 : vector<1x256xf32> to vector<16x256xf32>
    %27 = arith.addf %25, %26 : vector<16x256xf32>
    %28 = vector.extract_strided_slice %27 {offsets = [0, 0], sizes = [16, 8], strides = [1, 1]} : vector<16x256xf32> to vector<16x8xf32>
    %29 = vector.extract_strided_slice %27 {offsets = [0, 128], sizes = [16, 8], strides = [1, 1]} : vector<16x256xf32> to vector<16x8xf32>
    %30 = vector.extract_strided_slice %27 {offsets = [0, 136], sizes = [16, 1], strides = [1, 1]} : vector<16x256xf32> to vector<16x1xf32>
    %31 = math.exp %29 : vector<16x8xf32>
    %32 = arith.mulf %3, %31 : vector<16x8xf32>
    %33 = arith.addf %28, %32 : vector<16x8xf32>
    %c1_20 = arith.constant 1 : index
    %c0_21 = arith.constant 0 : index
    %c0_22 = arith.constant 0 : index
    %34 = vector.load %arg1[%c1_20, %c0_21, %c0_22] : memref<4x160x256xf32, #tpu.memory_space<vmem>>, vector<1x8x64xf32>
    %35 = vector.shape_cast %34 : vector<1x8x64xf32> to vector<8x64xf32>
    %c1_23 = arith.constant 1 : index
    %c8_24 = arith.constant 8 : index
    %c0_25 = arith.constant 0 : index
    %36 = vector.load %arg1[%c1_23, %c8_24, %c0_25] : memref<4x160x256xf32, #tpu.memory_space<vmem>>, vector<1x1x64xf32>
    %37 = vector.shape_cast %36 : vector<1x1x64xf32> to vector<1x64xf32>
    %c1_26 = arith.constant 1 : index
    %c16_27 = arith.constant 16 : index
    %c0_28 = arith.constant 0 : index
    %38 = vector.load %arg1[%c1_26, %c16_27, %c0_28] : memref<4x160x256xf32, #tpu.memory_space<vmem>>, vector<1x64x64xf32>
    %39 = vector.shape_cast %38 : vector<1x64x64xf32> to vector<64x64xf32>
    %c1_29 = arith.constant 1 : index
    %c80_30 = arith.constant 80 : index
    %c0_31 = arith.constant 0 : index
    %40 = vector.load %arg1[%c1_29, %c80_30, %c0_31] : memref<4x160x256xf32, #tpu.memory_space<vmem>>, vector<1x1x64xf32>
    %41 = vector.shape_cast %40 : vector<1x1x64xf32> to vector<1x64xf32>
    %c1_32 = arith.constant 1 : index
    %c88_33 = arith.constant 88 : index
    %c0_34 = arith.constant 0 : index
    %42 = vector.load %arg1[%c1_32, %c88_33, %c0_34] : memref<4x160x256xf32, #tpu.memory_space<vmem>>, vector<1x64x256xf32>
    %43 = vector.shape_cast %42 : vector<1x64x256xf32> to vector<64x256xf32>
    %c1_35 = arith.constant 1 : index
    %c152_36 = arith.constant 152 : index
    %c0_37 = arith.constant 0 : index
    %44 = vector.load %arg1[%c1_35, %c152_36, %c0_37] : memref<4x160x256xf32, #tpu.memory_space<vmem>>, vector<1x1x256xf32>
    %45 = vector.shape_cast %44 : vector<1x1x256xf32> to vector<1x256xf32>
    %cst_38 = arith.constant dense<0.000000e+00> : vector<16x64xf32>
    %46 = tpu.matmul %33, %35, %cst_38 {dimension_numbers = #tpu.dot_dimension_numbers<[1], [0], [0], [1], [0, 0, 1, 1], [], []>} : vector<16x8xf32>, vector<8x64xf32>, vector<16x64xf32> -> vector<16x64xf32>
    %47 = vector.broadcast %37 : vector<1x64xf32> to vector<16x64xf32>
    %48 = arith.addf %46, %47 : vector<16x64xf32>
    %49 = math.tanh %48 : vector<16x64xf32>
    %cst_39 = arith.constant dense<0.000000e+00> : vector<16x64xf32>
    %50 = tpu.matmul %49, %39, %cst_39 {dimension_numbers = #tpu.dot_dimension_numbers<[1], [0], [0], [1], [0, 0, 1, 1], [], []>} : vector<16x64xf32>, vector<64x64xf32>, vector<16x64xf32> -> vector<16x64xf32>
    %51 = vector.broadcast %41 : vector<1x64xf32> to vector<16x64xf32>
    %52 = arith.addf %50, %51 : vector<16x64xf32>
    %53 = math.tanh %52 : vector<16x64xf32>
    %cst_40 = arith.constant dense<0.000000e+00> : vector<16x256xf32>
    %54 = tpu.matmul %53, %43, %cst_40 {dimension_numbers = #tpu.dot_dimension_numbers<[1], [0], [0], [1], [0, 0, 1, 1], [], []>} : vector<16x64xf32>, vector<64x256xf32>, vector<16x256xf32> -> vector<16x256xf32>
    %55 = vector.broadcast %45 : vector<1x256xf32> to vector<16x256xf32>
    %56 = arith.addf %54, %55 : vector<16x256xf32>
    %57 = vector.extract_strided_slice %56 {offsets = [0, 0], sizes = [16, 8], strides = [1, 1]} : vector<16x256xf32> to vector<16x8xf32>
    %58 = vector.extract_strided_slice %56 {offsets = [0, 128], sizes = [16, 8], strides = [1, 1]} : vector<16x256xf32> to vector<16x8xf32>
    %59 = vector.extract_strided_slice %56 {offsets = [0, 136], sizes = [16, 1], strides = [1, 1]} : vector<16x256xf32> to vector<16x1xf32>
    %60 = math.exp %58 : vector<16x8xf32>
    %61 = arith.mulf %1, %60 : vector<16x8xf32>
    %62 = arith.addf %57, %61 : vector<16x8xf32>
    %63 = arith.addf %4, %30 : vector<16x1xf32>
    %64 = arith.addf %63, %59 : vector<16x1xf32>
    %c2 = arith.constant 2 : index
    %c0_41 = arith.constant 0 : index
    %c0_42 = arith.constant 0 : index
    %65 = vector.load %arg1[%c2, %c0_41, %c0_42] : memref<4x160x256xf32, #tpu.memory_space<vmem>>, vector<1x8x64xf32>
    %66 = vector.shape_cast %65 : vector<1x8x64xf32> to vector<8x64xf32>
    %c2_43 = arith.constant 2 : index
    %c8_44 = arith.constant 8 : index
    %c0_45 = arith.constant 0 : index
    %67 = vector.load %arg1[%c2_43, %c8_44, %c0_45] : memref<4x160x256xf32, #tpu.memory_space<vmem>>, vector<1x1x64xf32>
    %68 = vector.shape_cast %67 : vector<1x1x64xf32> to vector<1x64xf32>
    %c2_46 = arith.constant 2 : index
    %c16_47 = arith.constant 16 : index
    %c0_48 = arith.constant 0 : index
    %69 = vector.load %arg1[%c2_46, %c16_47, %c0_48] : memref<4x160x256xf32, #tpu.memory_space<vmem>>, vector<1x64x64xf32>
    %70 = vector.shape_cast %69 : vector<1x64x64xf32> to vector<64x64xf32>
    %c2_49 = arith.constant 2 : index
    %c80_50 = arith.constant 80 : index
    %c0_51 = arith.constant 0 : index
    %71 = vector.load %arg1[%c2_49, %c80_50, %c0_51] : memref<4x160x256xf32, #tpu.memory_space<vmem>>, vector<1x1x64xf32>
    %72 = vector.shape_cast %71 : vector<1x1x64xf32> to vector<1x64xf32>
    %c2_52 = arith.constant 2 : index
    %c88_53 = arith.constant 88 : index
    %c0_54 = arith.constant 0 : index
    %73 = vector.load %arg1[%c2_52, %c88_53, %c0_54] : memref<4x160x256xf32, #tpu.memory_space<vmem>>, vector<1x64x256xf32>
    %74 = vector.shape_cast %73 : vector<1x64x256xf32> to vector<64x256xf32>
    %c2_55 = arith.constant 2 : index
    %c152_56 = arith.constant 152 : index
    %c0_57 = arith.constant 0 : index
    %75 = vector.load %arg1[%c2_55, %c152_56, %c0_57] : memref<4x160x256xf32, #tpu.memory_space<vmem>>, vector<1x1x256xf32>
    %76 = vector.shape_cast %75 : vector<1x1x256xf32> to vector<1x256xf32>
    %cst_58 = arith.constant dense<0.000000e+00> : vector<16x64xf32>
    %77 = tpu.matmul %62, %66, %cst_58 {dimension_numbers = #tpu.dot_dimension_numbers<[1], [0], [0], [1], [0, 0, 1, 1], [], []>} : vector<16x8xf32>, vector<8x64xf32>, vector<16x64xf32> -> vector<16x64xf32>
    %78 = vector.broadcast %68 : vector<1x64xf32> to vector<16x64xf32>
    %79 = arith.addf %77, %78 : vector<16x64xf32>
    %80 = math.tanh %79 : vector<16x64xf32>
    %cst_59 = arith.constant dense<0.000000e+00> : vector<16x64xf32>
    %81 = tpu.matmul %80, %70, %cst_59 {dimension_numbers = #tpu.dot_dimension_numbers<[1], [0], [0], [1], [0, 0, 1, 1], [], []>} : vector<16x64xf32>, vector<64x64xf32>, vector<16x64xf32> -> vector<16x64xf32>
    %82 = vector.broadcast %72 : vector<1x64xf32> to vector<16x64xf32>
    %83 = arith.addf %81, %82 : vector<16x64xf32>
    %84 = math.tanh %83 : vector<16x64xf32>
    %cst_60 = arith.constant dense<0.000000e+00> : vector<16x256xf32>
    %85 = tpu.matmul %84, %74, %cst_60 {dimension_numbers = #tpu.dot_dimension_numbers<[1], [0], [0], [1], [0, 0, 1, 1], [], []>} : vector<16x64xf32>, vector<64x256xf32>, vector<16x256xf32> -> vector<16x256xf32>
    %86 = vector.broadcast %76 : vector<1x256xf32> to vector<16x256xf32>
    %87 = arith.addf %85, %86 : vector<16x256xf32>
    %88 = vector.extract_strided_slice %87 {offsets = [0, 0], sizes = [16, 8], strides = [1, 1]} : vector<16x256xf32> to vector<16x8xf32>
    %89 = vector.extract_strided_slice %87 {offsets = [0, 128], sizes = [16, 8], strides = [1, 1]} : vector<16x256xf32> to vector<16x8xf32>
    %90 = vector.extract_strided_slice %87 {offsets = [0, 136], sizes = [16, 1], strides = [1, 1]} : vector<16x256xf32> to vector<16x1xf32>
    %91 = math.exp %89 : vector<16x8xf32>
    %92 = arith.mulf %33, %91 : vector<16x8xf32>
    %93 = arith.addf %88, %92 : vector<16x8xf32>
    %c3 = arith.constant 3 : index
    %c0_61 = arith.constant 0 : index
    %c0_62 = arith.constant 0 : index
    %94 = vector.load %arg1[%c3, %c0_61, %c0_62] : memref<4x160x256xf32, #tpu.memory_space<vmem>>, vector<1x8x64xf32>
    %95 = vector.shape_cast %94 : vector<1x8x64xf32> to vector<8x64xf32>
    %c3_63 = arith.constant 3 : index
    %c8_64 = arith.constant 8 : index
    %c0_65 = arith.constant 0 : index
    %96 = vector.load %arg1[%c3_63, %c8_64, %c0_65] : memref<4x160x256xf32, #tpu.memory_space<vmem>>, vector<1x1x64xf32>
    %97 = vector.shape_cast %96 : vector<1x1x64xf32> to vector<1x64xf32>
    %c3_66 = arith.constant 3 : index
    %c16_67 = arith.constant 16 : index
    %c0_68 = arith.constant 0 : index
    %98 = vector.load %arg1[%c3_66, %c16_67, %c0_68] : memref<4x160x256xf32, #tpu.memory_space<vmem>>, vector<1x64x64xf32>
    %99 = vector.shape_cast %98 : vector<1x64x64xf32> to vector<64x64xf32>
    %c3_69 = arith.constant 3 : index
    %c80_70 = arith.constant 80 : index
    %c0_71 = arith.constant 0 : index
    %100 = vector.load %arg1[%c3_69, %c80_70, %c0_71] : memref<4x160x256xf32, #tpu.memory_space<vmem>>, vector<1x1x64xf32>
    %101 = vector.shape_cast %100 : vector<1x1x64xf32> to vector<1x64xf32>
    %c3_72 = arith.constant 3 : index
    %c88_73 = arith.constant 88 : index
    %c0_74 = arith.constant 0 : index
    %102 = vector.load %arg1[%c3_72, %c88_73, %c0_74] : memref<4x160x256xf32, #tpu.memory_space<vmem>>, vector<1x64x256xf32>
    %103 = vector.shape_cast %102 : vector<1x64x256xf32> to vector<64x256xf32>
    %c3_75 = arith.constant 3 : index
    %c152_76 = arith.constant 152 : index
    %c0_77 = arith.constant 0 : index
    %104 = vector.load %arg1[%c3_75, %c152_76, %c0_77] : memref<4x160x256xf32, #tpu.memory_space<vmem>>, vector<1x1x256xf32>
    %105 = vector.shape_cast %104 : vector<1x1x256xf32> to vector<1x256xf32>
    %cst_78 = arith.constant dense<0.000000e+00> : vector<16x64xf32>
    %106 = tpu.matmul %93, %95, %cst_78 {dimension_numbers = #tpu.dot_dimension_numbers<[1], [0], [0], [1], [0, 0, 1, 1], [], []>} : vector<16x8xf32>, vector<8x64xf32>, vector<16x64xf32> -> vector<16x64xf32>
    %107 = vector.broadcast %97 : vector<1x64xf32> to vector<16x64xf32>
    %108 = arith.addf %106, %107 : vector<16x64xf32>
    %109 = math.tanh %108 : vector<16x64xf32>
    %cst_79 = arith.constant dense<0.000000e+00> : vector<16x64xf32>
    %110 = tpu.matmul %109, %99, %cst_79 {dimension_numbers = #tpu.dot_dimension_numbers<[1], [0], [0], [1], [0, 0, 1, 1], [], []>} : vector<16x64xf32>, vector<64x64xf32>, vector<16x64xf32> -> vector<16x64xf32>
    %111 = vector.broadcast %101 : vector<1x64xf32> to vector<16x64xf32>
    %112 = arith.addf %110, %111 : vector<16x64xf32>
    %113 = math.tanh %112 : vector<16x64xf32>
    %cst_80 = arith.constant dense<0.000000e+00> : vector<16x256xf32>
    %114 = tpu.matmul %113, %103, %cst_80 {dimension_numbers = #tpu.dot_dimension_numbers<[1], [0], [0], [1], [0, 0, 1, 1], [], []>} : vector<16x64xf32>, vector<64x256xf32>, vector<16x256xf32> -> vector<16x256xf32>
    %115 = vector.broadcast %105 : vector<1x256xf32> to vector<16x256xf32>
    %116 = arith.addf %114, %115 : vector<16x256xf32>
    %117 = vector.extract_strided_slice %116 {offsets = [0, 0], sizes = [16, 8], strides = [1, 1]} : vector<16x256xf32> to vector<16x8xf32>
    %118 = vector.extract_strided_slice %116 {offsets = [0, 128], sizes = [16, 8], strides = [1, 1]} : vector<16x256xf32> to vector<16x8xf32>
    %119 = vector.extract_strided_slice %116 {offsets = [0, 136], sizes = [16, 1], strides = [1, 1]} : vector<16x256xf32> to vector<16x1xf32>
    %120 = math.exp %118 : vector<16x8xf32>
    %121 = arith.mulf %62, %120 : vector<16x8xf32>
    %122 = arith.addf %117, %121 : vector<16x8xf32>
    %123 = arith.addf %64, %90 : vector<16x1xf32>
    %124 = arith.addf %123, %119 : vector<16x1xf32>
    %125 = vector.shape_cast %124 : vector<16x1xf32> to vector<16x1xf32>
    %126 = vector.broadcast %125 : vector<16x1xf32> to vector<16x112xf32>
    %127 = tpu.concatenate %122, %93, %126 in 1 : vector<16x8xf32>, vector<16x8xf32>, vector<16x112xf32> -> vector<16x128xf32>
    %c0_81 = arith.constant 0 : index
    %c0_82 = arith.constant 0 : index
    %128 = vector.load %arg2[%c0_81, %c0_82] : memref<16x128xf32, #tpu.memory_space<vmem>>, vector<16x128xf32>
    tpu.vector_store %arg2[%c0_81, %c0_82], %127 {strides = array<i32>} : memref<16x128xf32, #tpu.memory_space<vmem>>, vector<16x128xf32>,
    return
  }
}

</mosaic_0001>

<llo_original>
// kernel: tpu_custom_call.1
$region0: #{tpu_custom_call.1}
  #allocation0 [shape = 'u32[]', space=smem, size = 0x4, offset = 0x4, fixed_abs, tag = 'smem constant byte address 0x4 - core index']
  #allocation1 [shape = 'u32[72,128]{1,0:T(1,128)}', space=vmem, size = 0x9000, scoped, tag = 'internal scratch']
  %s0 = inlined_call_operand.vmem [shape: f32[2,16,8], index: 0, kind: input, shape index: {}]
  %s1 = inlined_call_operand.hbm [shape: f32[4,160,256], index: 1, kind: input, shape index: {}]
  %s2 = inlined_call_operand.hbm [shape: f32[16,128], index: 2, kind: output, shape index: {}]
  %s3 = sld [smem:[#allocation0]]
  $region22: #{tpu_custom_call.1} parent=0
    _
  %s5 = ssub.s32 1, %s3
  %s6 = scalar_select 0, %s5, %s3
  $region1: #{tpu_custom_call.1} parent=0
    #allocation2 [shape = 'u8[655360]{0}', space=vmem, size = 0xa0000, scoped, tag = 'input window, operand 1, single buffered']
    #allocation3 [shape = 's32[1]{0}', space=sflag, size = 0x4, scoped, tag = 'scoped memory for tpu_custom_call.1']
    #allocation4 [shape = 's32[1]{0}', space=sflag, size = 0x4, scoped, tag = 'scoped memory for tpu_custom_call.1']
    #allocation5 [shape = 'u8[8192]{0}', space=vmem, size = 0x2000, scoped, tag = 'output window, operand 0, single buffered']
    %7 = vsyncpa [#allocation3], 0
    %8 = vsyncpa [#allocation4], 0
    // Predicated region
    $region2: #{tpu_custom_call.1} parent=1 // pred_check
      _
    $region3: #{tpu_custom_call.1} parent=1 // pred_check_branch
      %10 = sbr.rel (0) target = $region5
    $region4: #{tpu_custom_call.1} parent=1 // pred_region
      _
    $region5: #{tpu_custom_call.1} parent=1 // pred_fallthru
      _
    // Predicated region
    $region6: #{tpu_custom_call.1} parent=1 // pred_check
      _
    $region7: #{tpu_custom_call.1} parent=1 // pred_check_branch
      %12 = sbr.rel (0) target = $region9
    $region8: #{tpu_custom_call.1} parent=1 // pred_region
      %14 = vsyncadd [#allocation3], 0
      %s15 = sshll.u32 %s1, 4
      %s16 = int_to_ptr.hbm [resolvable:$true] %s15
      %s17 = sshll.u32 [#allocation2], 4
      %s18 = int_to_ptr.vmem [resolvable:$true] %s17
      %23 = dma.hbm_to_vmem [thread:$0]  %s16, 20480, %s18, [#allocation3], 256, 256, 16
    $region9: #{tpu_custom_call.1} parent=1 // pred_fallthru
      _
    // Predicated region
    $region10: #{tpu_custom_call.1} parent=1 // pred_check
      _
    $region11: #{tpu_custom_call.1} parent=1 // pred_check_branch
      %25 = sbr.rel (0) target = $region13
    $region12: #{tpu_custom_call.1} parent=1 // pred_region
      %27 = dma.done [#allocation3], 20480
    $region13: #{tpu_custom_call.1} parent=1 // pred_fallthru
      _
    %v28 = vld [vmem:[%s0] sm:$0xff]
    %v29 = vld [vmem:[%s0 + $0x8] sm:$0xff]
    %s30 = scalar_lea.vmem %s0, 16
    %v31 = vld [vmem:[%s30] sm:$0xff]
    %v32 = vld [vmem:[%s30 + $0x8] sm:$0xff]
    %v33 = vld [vmem:[#allocation2] sm:$0xff]
    %v34 = vld [vmem:[#allocation2 + $0x10] ss:$0 sm:$0xff]
    %v35 = vld [vmem:[#allocation2 + $0x20] sm:$0xff]
    %v36 = vld [vmem:[#allocation2 + $0x30] sm:$0xff]
    %v37 = vld [vmem:[#allocation2 + $0x40] sm:$0xff]
    %v38 = vld [vmem:[#allocation2 + $0x50] sm:$0xff]
    %v39 = vld [vmem:[#allocation2 + $0x60] sm:$0xff]
    %v40 = vld [vmem:[#allocation2 + $0x70] sm:$0xff]
    %v41 = vld [vmem:[#allocation2 + $0x80] sm:$0xff]
    %v42 = vld [vmem:[#allocation2 + $0x90] sm:$0xff]
    %v43 = vld [vmem:[#allocation2 + $0xa0] ss:$0 sm:$0xff]
    %v44 = vld [vmem:[#allocation2 + $0xb0] sm:$0xff]
    %v45 = vld [vmem:[#allocation2 + $0xb8] sm:$0xff]
    %v46 = vld [vmem:[#allocation2 + $0xc0] sm:$0xff]
    %v47 = vld [vmem:[#allocation2 + $0xc8] sm:$0xff]
    %v48 = vld [vmem:[#allocation2 + $0xd0] sm:$0xff]
    %v49 = vld [vmem:[#allocation2 + $0xd8] sm:$0xff]
    %v50 = vld [vmem:[#allocation2 + $0xe0] sm:$0xff]
    %v51 = vld [vmem:[#allocation2 + $0xe8] sm:$0xff]
    %v52 = vld [vmem:[#allocation2 + $0xf0] sm:$0xff]
    %v53 = vld [vmem:[#allocation2 + $0xf8] sm:$0xff]
    %v54 = vld [vmem:[#allocation2 + $0x100] sm:$0xff]
    %v55 = vld [vmem:[#allocation2 + $0x108] sm:$0xff]
    %v56 = vld [vmem:[#allocation2 + $0x110] sm:$0xff]
    %v57 = vld [vmem:[#allocation2 + $0x118] sm:$0xff]
    %v58 = vld [vmem:[#allocation2 + $0x120] sm:$0xff]
    %v59 = vld [vmem:[#allocation2 + $0x128] sm:$0xff]
    %s60 = scalar_lea.vmem [#allocation2], 304
    %v61 = vld [vmem:[%s60] ss:$8 sm:$0x3]
    %vm62 = vcmask 64512
    %v64 = vsel %vm62, %v28, 0
    %v67 = vsel %vm62, %v29, 0
    %69 = vmatpush.msra.mxu0 0.0
    %70 = vmatpush.msra.mxu0 0.0
    %71 = vmatpush.msra.mxu0 0.0
    %72 = vmatpush.msra.mxu0 0.0
    %73 = vmatpush.msra.mxu0 0.0
    %74 = vmatpush.msra.mxu0 0.0
    %75 = vmatpush.msra.mxu0 0.0
    %76 = vmatpush.msra.mxu0 0.0
    %77 = vmatpush.msra.mxu0 0.0
    %78 = vmatpush.msra.mxu0 0.0
    %79 = vmatpush.msra.mxu0 0.0
    %80 = vmatpush.msra.mxu0 0.0
    %81 = vmatpush.msra.mxu0 0.0
    %82 = vmatpush.msra.mxu0 0.0
    %83 = vmatpush.msra.mxu0 0.0
    %84 = vmatpush.msra.mxu0 %v33
    %85 = vmatmul.f32.gmra.mxu0 %v64
    %v86 = vpop.f32.mrf.mxu0
    %v87 = vadd.f32 %v34, %v86
    %88 = vmatmul.f32.gmra.mxu0 %v67
    %v89 = vpop.f32.mrf.mxu0
    %v90 = vadd.f32 %v34, %v89
    %91 = vdwg.mxu0
    %v92 = vtanh.pop %v87
    %v93 = vtanh.pop %v90
    %vm94 = vcmask 523264
    %v96 = vsel %vm94, %v92, 0
    %v99 = vsel %vm94, %v93, 0
    %101 = vmatpush.msra.mxu0 0.0
    %102 = vmatpush.msra.mxu0 0.0
    %103 = vmatpush.msra.mxu0 0.0
    %104 = vmatpush.msra.mxu0 0.0
    %105 = vmatpush.msra.mxu0 0.0
    %106 = vmatpush.msra.mxu0 0.0
    %107 = vmatpush.msra.mxu0 0.0
    %108 = vmatpush.msra.mxu0 0.0
    %109 = vmatpush.msra.mxu0 %v42
    %110 = vmatpush.msra.mxu0 %v41
    %111 = vmatpush.msra.mxu0 %v40
    %112 = vmatpush.msra.mxu0 %v39
    %113 = vmatpush.msra.mxu0 %v38
    %114 = vmatpush.msra.mxu0 %v37
    %115 = vmatpush.msra.mxu0 %v36
    %116 = vmatpush.msra.mxu0 %v35
    %117 = vmatmul.f32.gmra.mxu0 %v96
    %v118 = vpop.f32.mrf.mxu0
    %v119 = vadd.f32 %v43, %v118
    %120 = vmatmul.f32.gmra.mxu0 %v99
    %v121 = vpop.f32.mrf.mxu0
    %v122 = vadd.f32 %v43, %v121
    %123 = vdwg.mxu0
    %v124 = vtanh.pop %v119
    %v125 = vtanh.pop %v122
    %v127 = vperm.slane %v61, 0
    %v128 = vperm.slane %v61, 1
    %v132 = vsel %vm94, %v124, 0
    %v135 = vsel %vm94, %v125, 0
    %137 = vmatpush.msra.mxu0 0.0
    %138 = vmatpush.msra.mxu0 0.0
    %139 = vmatpush.msra.mxu0 0.0
    %140 = vmatpush.msra.mxu0 0.0
    %141 = vmatpush.msra.mxu0 0.0
    %142 = vmatpush.msra.mxu0 0.0
    %143 = vmatpush.msra.mxu0 0.0
    %144 = vmatpush.msra.mxu0 0.0
    %145 = vmatpush.msra.mxu0 %v58
    %146 = vmatpush.msra.mxu0 %v56
    %147 = vmatpush.msra.mxu0 %v54
    %148 = vmatpush.msra.mxu0 %v52
    %149 = vmatpush.msra.mxu0 %v50
    %150 = vmatpush.msra.mxu0 %v48
    %151 = vmatpush.msra.mxu0 %v46
    %152 = vmatpush.msra.mxu0 %v44
    %153 = vmatmul.f32.gmra.mxu0 %v132
    %v154 = vpop.f32.mrf.mxu0
    %v155 = vadd.f32 %v127, %v154
    %156 = vmatmul.f32.gmra.mxu0 %v135
    %v157 = vpop.f32.mrf.mxu0
    %v158 = vadd.f32 %v127, %v157
    %159 = vdwg.mxu0
    %160 = vmatpush.msra.mxu0 0.0
    %161 = vmatpush.msra.mxu0 0.0
    %162 = vmatpush.msra.mxu0 0.0
    %163 = vmatpush.msra.mxu0 0.0
    %164 = vmatpush.msra.mxu0 0.0
    %165 = vmatpush.msra.mxu0 0.0
    %166 = vmatpush.msra.mxu0 0.0
    %167 = vmatpush.msra.mxu0 0.0
    %168 = vmatpush.msra.mxu0 %v59
    %169 = vmatpush.msra.mxu0 %v57
    %170 = vmatpush.msra.mxu0 %v55
    %171 = vmatpush.msra.mxu0 %v53
    %172 = vmatpush.msra.mxu0 %v51
    %173 = vmatpush.msra.mxu0 %v49
    %174 = vmatpush.msra.mxu0 %v47
    %175 = vmatpush.msra.mxu0 %v45
    %176 = vmatmul.f32.gmra.mxu0 %v132
    %v177 = vpop.f32.mrf.mxu0
    %v178 = vadd.f32 %v128, %v177
    %179 = vmatmul.f32.gmra.mxu0 %v135
    %v180 = vpop.f32.mrf.mxu0
    %v181 = vadd.f32 %v128, %v180
    %182 = vdwg.mxu0
    %v183 = vmul.f32 %v178, 1.442695
    %v184 = vpow.pop %v183
    %v185 = vmul.f32 %v181, 1.442695
    %v186 = vpow.pop %v185
    %v187 = vmul.f32 %v31, %v184
    %v188 = vmul.f32 %v32, %v186
    %v189 = vadd.f32 %v155, %v187
    %v190 = vadd.f32 %v158, %v188
    %s191 = scalar_lea.vmem [#allocation2], 320
    %v192 = vld [vmem:[%s191] sm:$0xff]
    %v193 = vld [vmem:[%s191 + $0x10] ss:$0 sm:$0xff]
    %v194 = vld [vmem:[%s191 + $0x20] sm:$0xff]
    %v195 = vld [vmem:[%s191 + $0x30] sm:$0xff]
    %v196 = vld [vmem:[%s191 + $0x40] sm:$0xff]
    %v197 = vld [vmem:[%s191 + $0x50] sm:$0xff]
    %v198 = vld [vmem:[%s191 + $0x60] sm:$0xff]
    %v199 = vld [vmem:[%s191 + $0x70] sm:$0xff]
    %v200 = vld [vmem:[%s191 + $0x80] sm:$0xff]
    %v201 = vld [vmem:[%s191 + $0x90] sm:$0xff]
    %v202 = vld [vmem:[%s191 + $0xa0] ss:$0 sm:$0xff]
    %v203 = vld [vmem:[%s191 + $0xb0] sm:$0xff]
    %v204 = vld [vmem:[%s191 + $0xb8] sm:$0xff]
    %v205 = vld [vmem:[%s191 + $0xc0] sm:$0xff]
    %v206 = vld [vmem:[%s191 + $0xc8] sm:$0xff]
    %v207 = vld [vmem:[%s191 + $0xd0] sm:$0xff]
    %v208 = vld [vmem:[%s191 + $0xd8] sm:$0xff]
    %v209 = vld [vmem:[%s191 + $0xe0] sm:$0xff]
    %v210 = vld [vmem:[%s191 + $0xe8] sm:$0xff]
    %v211 = vld [vmem:[%s191 + $0xf0] sm:$0xff]
    %v212 = vld [vmem:[%s191 + $0xf8] sm:$0xff]
    %v213 = vld [vmem:[%s191 + $0x100] sm:$0xff]
    %v214 = vld [vmem:[%s191 + $0x108] sm:$0xff]
    %v215 = vld [vmem:[%s191 + $0x110] sm:$0xff]
    %v216 = vld [vmem:[%s191 + $0x118] sm:$0xff]
    %v217 = vld [vmem:[%s191 + $0x120] sm:$0xff]
    %v218 = vld [vmem:[%s191 + $0x128] sm:$0xff]
    %s219 = scalar_lea.vmem %s191, 304 [#allocation2]
    %v220 = vld [vmem:[%s219] ss:$8 sm:$0x3]
    %v222 = vsel %vm62, %v189, 0
    %v225 = vsel %vm62, %v190, 0
    %227 = vmatpush.msra.mxu0 0.0
    %228 = vmatpush.msra.mxu0 0.0
    %229 = vmatpush.msra.mxu0 0.0
    %230 = vmatpush.msra.mxu0 0.0
    %231 = vmatpush.msra.mxu0 0.0
    %232 = vmatpush.msra.mxu0 0.0
    %233 = vmatpush.msra.mxu0 0.0
    %234 = vmatpush.msra.mxu0 0.0
    %235 = vmatpush.msra.mxu0 0.0
    %236 = vmatpush.msra.mxu0 0.0
    %237 = vmatpush.msra.mxu0 0.0
    %238 = vmatpush.msra.mxu0 0.0
    %239 = vmatpush.msra.mxu0 0.0
    %240 = vmatpush.msra.mxu0 0.0
    %241 = vmatpush.msra.mxu0 0.0
    %242 = vmatpush.msra.mxu0 %v192
    %243 = vmatmul.f32.gmra.mxu0 %v222
    %v244 = vpop.f32.mrf.mxu0
    %v245 = vadd.f32 %v193, %v244
    %246 = vmatmul.f32.gmra.mxu0 %v225
    %v247 = vpop.f32.mrf.mxu0
    %v248 = vadd.f32 %v193, %v247
    %249 = vdwg.mxu0
    %v250 = vtanh.pop %v245
    %v251 = vtanh.pop %v248
    %v253 = vsel %vm94, %v250, 0
    %v256 = vsel %vm94, %v251, 0
    %258 = vmatpush.msra.mxu0 0.0
    %259 = vmatpush.msra.mxu0 0.0
    %260 = vmatpush.msra.mxu0 0.0
    %261 = vmatpush.msra.mxu0 0.0
    %262 = vmatpush.msra.mxu0 0.0
    %263 = vmatpush.msra.mxu0 0.0
    %264 = vmatpush.msra.mxu0 0.0
    %265 = vmatpush.msra.mxu0 0.0
    %266 = vmatpush.msra.mxu0 %v201
    %267 = vmatpush.msra.mxu0 %v200
    %268 = vmatpush.msra.mxu0 %v199
    %269 = vmatpush.msra.mxu0 %v198
    %270 = vmatpush.msra.mxu0 %v197
    %271 = vmatpush.msra.mxu0 %v196
    %272 = vmatpush.msra.mxu0 %v195
    %273 = vmatpush.msra.mxu0 %v194
    %274 = vmatmul.f32.gmra.mxu0 %v253
    %v275 = vpop.f32.mrf.mxu0
    %v276 = vadd.f32 %v202, %v275
    %277 = vmatmul.f32.gmra.mxu0 %v256
    %v278 = vpop.f32.mrf.mxu0
    %v279 = vadd.f32 %v202, %v278
    %280 = vdwg.mxu0
    %v281 = vtanh.pop %v276
    %v282 = vtanh.pop %v279
    %v284 = vperm.slane %v220, 0
    %v285 = vperm.slane %v220, 1
    %v289 = vsel %vm94, %v281, 0
    %v292 = vsel %vm94, %v282, 0
    %294 = vmatpush.msra.mxu0 0.0
    %295 = vmatpush.msra.mxu0 0.0
    %296 = vmatpush.msra.mxu0 0.0
    %297 = vmatpush.msra.mxu0 0.0
    %298 = vmatpush.msra.mxu0 0.0
    %299 = vmatpush.msra.mxu0 0.0
    %300 = vmatpush.msra.mxu0 0.0
    %301 = vmatpush.msra.mxu0 0.0
    %302 = vmatpush.msra.mxu0 %v217
    %303 = vmatpush.msra.mxu0 %v215
    %304 = vmatpush.msra.mxu0 %v213
    %305 = vmatpush.msra.mxu0 %v211
    %306 = vmatpush.msra.mxu0 %v209
    %307 = vmatpush.msra.mxu0 %v207
    %308 = vmatpush.msra.mxu0 %v205
    %309 = vmatpush.msra.mxu0 %v203
    %310 = vmatmul.f32.gmra.mxu0 %v289
    %v311 = vpop.f32.mrf.mxu0
    %v312 = vadd.f32 %v284, %v311
    %313 = vmatmul.f32.gmra.mxu0 %v292
    %v314 = vpop.f32.mrf.mxu0
    %v315 = vadd.f32 %v284, %v314
    %316 = vdwg.mxu0
    %317 = vmatpush.msra.mxu0 0.0
    %318 = vmatpush.msra.mxu0 0.0
    %319 = vmatpush.msra.mxu0 0.0
    %320 = vmatpush.msra.mxu0 0.0
    %321 = vmatpush.msra.mxu0 0.0
    %322 = vmatpush.msra.mxu0 0.0
    %323 = vmatpush.msra.mxu0 0.0
    %324 = vmatpush.msra.mxu0 0.0
    %325 = vmatpush.msra.mxu0 %v218
    %326 = vmatpush.msra.mxu0 %v216
    %327 = vmatpush.msra.mxu0 %v214
    %328 = vmatpush.msra.mxu0 %v212
    %329 = vmatpush.msra.mxu0 %v210
    %330 = vmatpush.msra.mxu0 %v208
    %331 = vmatpush.msra.mxu0 %v206
    %332 = vmatpush.msra.mxu0 %v204
    %333 = vmatmul.f32.gmra.mxu0 %v289
    %v334 = vpop.f32.mrf.mxu0
    %v335 = vadd.f32 %v285, %v334
    %336 = vmatmul.f32.gmra.mxu0 %v292
    %v337 = vpop.f32.mrf.mxu0
    %v338 = vadd.f32 %v285, %v337
    %339 = vdwg.mxu0
    %v340 = vmul.f32 %v335, 1.442695
    %v341 = vpow.pop %v340
    %v342 = vmul.f32 %v338, 1.442695
    %v343 = vpow.pop %v342
    %v344 = vmul.f32 %v28, %v341
    %v345 = vmul.f32 %v29, %v343
    %v346 = vadd.f32 %v312, %v344
    %v347 = vadd.f32 %v315, %v345
    %v348 = vadd.f32 %v178, 0.0
    %v349 = vadd.f32 %v181, 0.0
    %v350 = vadd.f32 %v348, %v335
    %v351 = vadd.f32 %v349, %v338
    %s352 = scalar_lea.vmem [#allocation2], 640
    %v353 = vld [vmem:[%s352] sm:$0xff]
    %v354 = vld [vmem:[%s352 + $0x10] ss:$0 sm:$0xff]
    %v355 = vld [vmem:[%s352 + $0x20] sm:$0xff]
    %v356 = vld [vmem:[%s352 + $0x30] sm:$0xff]
    %v357 = vld [vmem:[%s352 + $0x40] sm:$0xff]
    %v358 = vld [vmem:[%s352 + $0x50] sm:$0xff]
    %v359 = vld [vmem:[%s352 + $0x60] sm:$0xff]
    %v360 = vld [vmem:[%s352 + $0x70] sm:$0xff]
    %v361 = vld [vmem:[%s352 + $0x80] sm:$0xff]
    %v362 = vld [vmem:[%s352 + $0x90] sm:$0xff]
    %v363 = vld [vmem:[%s352 + $0xa0] ss:$0 sm:$0xff]
    %v364 = vld [vmem:[%s352 + $0xb0] sm:$0xff]
    %v365 = vld [vmem:[%s352 + $0xb8] sm:$0xff]
    %v366 = vld [vmem:[%s352 + $0xc0] sm:$0xff]
    %v367 = vld [vmem:[%s352 + $0xc8] sm:$0xff]
    %v368 = vld [vmem:[%s352 + $0xd0] sm:$0xff]
    %v369 = vld [vmem:[%s352 + $0xd8] sm:$0xff]
    %v370 = vld [vmem:[%s352 + $0xe0] sm:$0xff]
    %v371 = vld [vmem:[%s352 + $0xe8] sm:$0xff]
    %v372 = vld [vmem:[%s352 + $0xf0] sm:$0xff]
    %v373 = vld [vmem:[%s352 + $0xf8] sm:$0xff]
    %v374 = vld [vmem:[%s352 + $0x100] sm:$0xff]
    %v375 = vld [vmem:[%s352 + $0x108] sm:$0xff]
    %v376 = vld [vmem:[%s352 + $0x110] sm:$0xff]
    %v377 = vld [vmem:[%s352 + $0x118] sm:$0xff]
    %v378 = vld [vmem:[%s352 + $0x120] sm:$0xff]
    %v379 = vld [vmem:[%s352 + $0x128] sm:$0xff]
    %s380 = scalar_lea.vmem %s352, 304 [#allocation2]
    %v381 = vld [vmem:[%s380] ss:$8 sm:$0x3]
    %v383 = vsel %vm62, %v346, 0
    %v386 = vsel %vm62, %v347, 0
    %388 = vmatpush.msra.mxu0 0.0
    %389 = vmatpush.msra.mxu0 0.0
    %390 = vmatpush.msra.mxu0 0.0
    %391 = vmatpush.msra.mxu0 0.0
    %392 = vmatpush.msra.mxu0 0.0
    %393 = vmatpush.msra.mxu0 0.0
    %394 = vmatpush.msra.mxu0 0.0
    %395 = vmatpush.msra.mxu0 0.0
    %396 = vmatpush.msra.mxu0 0.0
    %397 = vmatpush.msra.mxu0 0.0
    %398 = vmatpush.msra.mxu0 0.0
    %399 = vmatpush.msra.mxu0 0.0
    %400 = vmatpush.msra.mxu0 0.0
    %401 = vmatpush.msra.mxu0 0.0
    %402 = vmatpush.msra.mxu0 0.0
    %403 = vmatpush.msra.mxu0 %v353
    %404 = vmatmul.f32.gmra.mxu0 %v383
    %v405 = vpop.f32.mrf.mxu0
    %v406 = vadd.f32 %v354, %v405
    %407 = vmatmul.f32.gmra.mxu0 %v386
    %v408 = vpop.f32.mrf.mxu0
    %v409 = vadd.f32 %v354, %v408
    %410 = vdwg.mxu0
    %v411 = vtanh.pop %v406
    %v412 = vtanh.pop %v409
    %v414 = vsel %vm94, %v411, 0
    %v417 = vsel %vm94, %v412, 0
    %419 = vmatpush.msra.mxu0 0.0
    %420 = vmatpush.msra.mxu0 0.0
    %421 = vmatpush.msra.mxu0 0.0
    %422 = vmatpush.msra.mxu0 0.0
    %423 = vmatpush.msra.mxu0 0.0
    %424 = vmatpush.msra.mxu0 0.0
    %425 = vmatpush.msra.mxu0 0.0
    %426 = vmatpush.msra.mxu0 0.0
    %427 = vmatpush.msra.mxu0 %v362
    %428 = vmatpush.msra.mxu0 %v361
    %429 = vmatpush.msra.mxu0 %v360
    %430 = vmatpush.msra.mxu0 %v359
    %431 = vmatpush.msra.mxu0 %v358
    %432 = vmatpush.msra.mxu0 %v357
    %433 = vmatpush.msra.mxu0 %v356
    %434 = vmatpush.msra.mxu0 %v355
    %435 = vmatmul.f32.gmra.mxu0 %v414
    %v436 = vpop.f32.mrf.mxu0
    %v437 = vadd.f32 %v363, %v436
    %438 = vmatmul.f32.gmra.mxu0 %v417
    %v439 = vpop.f32.mrf.mxu0
    %v440 = vadd.f32 %v363, %v439
    %441 = vdwg.mxu0
    %v442 = vtanh.pop %v437
    %v443 = vtanh.pop %v440
    %v445 = vperm.slane %v381, 0
    %v446 = vperm.slane %v381, 1
    %v450 = vsel %vm94, %v442, 0
    %v453 = vsel %vm94, %v443, 0
    %455 = vmatpush.msra.mxu0 0.0
    %456 = vmatpush.msra.mxu0 0.0
    %457 = vmatpush.msra.mxu0 0.0
    %458 = vmatpush.msra.mxu0 0.0
    %459 = vmatpush.msra.mxu0 0.0
    %460 = vmatpush.msra.mxu0 0.0
    %461 = vmatpush.msra.mxu0 0.0
    %462 = vmatpush.msra.mxu0 0.0
    %463 = vmatpush.msra.mxu0 %v378
    %464 = vmatpush.msra.mxu0 %v376
    %465 = vmatpush.msra.mxu0 %v374
    %466 = vmatpush.msra.mxu0 %v372
    %467 = vmatpush.msra.mxu0 %v370
    %468 = vmatpush.msra.mxu0 %v368
    %469 = vmatpush.msra.mxu0 %v366
    %470 = vmatpush.msra.mxu0 %v364
    %471 = vmatmul.f32.gmra.mxu0 %v450
    %v472 = vpop.f32.mrf.mxu0
    %v473 = vadd.f32 %v445, %v472
    %474 = vmatmul.f32.gmra.mxu0 %v453
    %v475 = vpop.f32.mrf.mxu0
    %v476 = vadd.f32 %v445, %v475
    %477 = vdwg.mxu0
    %478 = vmatpush.msra.mxu0 0.0
    %479 = vmatpush.msra.mxu0 0.0
    %480 = vmatpush.msra.mxu0 0.0
    %481 = vmatpush.msra.mxu0 0.0
    %482 = vmatpush.msra.mxu0 0.0
    %483 = vmatpush.msra.mxu0 0.0
    %484 = vmatpush.msra.mxu0 0.0
    %485 = vmatpush.msra.mxu0 0.0
    %486 = vmatpush.msra.mxu0 %v379
    %487 = vmatpush.msra.mxu0 %v377
    %488 = vmatpush.msra.mxu0 %v375
    %489 = vmatpush.msra.mxu0 %v373
    %490 = vmatpush.msra.mxu0 %v371
    %491 = vmatpush.msra.mxu0 %v369
    %492 = vmatpush.msra.mxu0 %v367
    %493 = vmatpush.msra.mxu0 %v365
    %494 = vmatmul.f32.gmra.mxu0 %v450
    %v495 = vpop.f32.mrf.mxu0
    %v496 = vadd.f32 %v446, %v495
    %497 = vmatmul.f32.gmra.mxu0 %v453
    %v498 = vpop.f32.mrf.mxu0
    %v499 = vadd.f32 %v446, %v498
    %500 = vdwg.mxu0
    %v501 = vmul.f32 %v496, 1.442695
    %v502 = vpow.pop %v501
    %v503 = vmul.f32 %v499, 1.442695
    %v504 = vpow.pop %v503
    %v505 = vmul.f32 %v189, %v502
    %v506 = vmul.f32 %v190, %v504
    %v507 = vadd.f32 %v473, %v505
    %v508 = vadd.f32 %v476, %v506
    %s509 = scalar_lea.vmem [#allocation2], 960
    %v510 = vld [vmem:[%s509] sm:$0xff]
    %v511 = vld [vmem:[%s509 + $0x10] ss:$0 sm:$0xff]
    %v512 = vld [vmem:[%s509 + $0x20] sm:$0xff]
    %v513 = vld [vmem:[%s509 + $0x30] sm:$0xff]
    %v514 = vld [vmem:[%s509 + $0x40] sm:$0xff]
    %v515 = vld [vmem:[%s509 + $0x50] sm:$0xff]
    %v516 = vld [vmem:[%s509 + $0x60] sm:$0xff]
    %v517 = vld [vmem:[%s509 + $0x70] sm:$0xff]
    %v518 = vld [vmem:[%s509 + $0x80] sm:$0xff]
    %v519 = vld [vmem:[%s509 + $0x90] sm:$0xff]
    %v520 = vld [vmem:[%s509 + $0xa0] ss:$0 sm:$0xff]
    %v521 = vld [vmem:[%s509 + $0xb0] sm:$0xff]
    %v522 = vld [vmem:[%s509 + $0xb8] sm:$0xff]
    %v523 = vld [vmem:[%s509 + $0xc0] sm:$0xff]
    %v524 = vld [vmem:[%s509 + $0xc8] sm:$0xff]
    %v525 = vld [vmem:[%s509 + $0xd0] sm:$0xff]
    %v526 = vld [vmem:[%s509 + $0xd8] sm:$0xff]
    %v527 = vld [vmem:[%s509 + $0xe0] sm:$0xff]
    %v528 = vld [vmem:[%s509 + $0xe8] sm:$0xff]
    %v529 = vld [vmem:[%s509 + $0xf0] sm:$0xff]
    %v530 = vld [vmem:[%s509 + $0xf8] sm:$0xff]
    %v531 = vld [vmem:[%s509 + $0x100] sm:$0xff]
    %v532 = vld [vmem:[%s509 + $0x108] sm:$0xff]
    %v533 = vld [vmem:[%s509 + $0x110] sm:$0xff]
    %v534 = vld [vmem:[%s509 + $0x118] sm:$0xff]
    %v535 = vld [vmem:[%s509 + $0x120] sm:$0xff]
    %v536 = vld [vmem:[%s509 + $0x128] sm:$0xff]
    %s537 = scalar_lea.vmem %s509, 304 [#allocation2]
    %v538 = vld [vmem:[%s537] ss:$8 sm:$0x3]
    %v540 = vsel %vm62, %v507, 0
    %v543 = vsel %vm62, %v508, 0
    %545 = vmatpush.msra.mxu0 0.0
    %546 = vmatpush.msra.mxu0 0.0
    %547 = vmatpush.msra.mxu0 0.0
    %548 = vmatpush.msra.mxu0 0.0
    %549 = vmatpush.msra.mxu0 0.0
    %550 = vmatpush.msra.mxu0 0.0
    %551 = vmatpush.msra.mxu0 0.0
    %552 = vmatpush.msra.mxu0 0.0
    %553 = vmatpush.msra.mxu0 0.0
    %554 = vmatpush.msra.mxu0 0.0
    %555 = vmatpush.msra.mxu0 0.0
    %556 = vmatpush.msra.mxu0 0.0
    %557 = vmatpush.msra.mxu0 0.0
    %558 = vmatpush.msra.mxu0 0.0
    %559 = vmatpush.msra.mxu0 0.0
    %560 = vmatpush.msra.mxu0 %v510
    %561 = vmatmul.f32.gmra.mxu0 %v540
    %v562 = vpop.f32.mrf.mxu0
    %v563 = vadd.f32 %v511, %v562
    %564 = vmatmul.f32.gmra.mxu0 %v543
    %v565 = vpop.f32.mrf.mxu0
    %v566 = vadd.f32 %v511, %v565
    %567 = vdwg.mxu0
    %v568 = vtanh.pop %v563
    %v569 = vtanh.pop %v566
    %v571 = vsel %vm94, %v568, 0
    %v574 = vsel %vm94, %v569, 0
    %576 = vmatpush.msra.mxu0 0.0
    %577 = vmatpush.msra.mxu0 0.0
    %578 = vmatpush.msra.mxu0 0.0
    %579 = vmatpush.msra.mxu0 0.0
    %580 = vmatpush.msra.mxu0 0.0
    %581 = vmatpush.msra.mxu0 0.0
    %582 = vmatpush.msra.mxu0 0.0
    %583 = vmatpush.msra.mxu0 0.0
    %584 = vmatpush.msra.mxu0 %v519
    %585 = vmatpush.msra.mxu0 %v518
    %586 = vmatpush.msra.mxu0 %v517
    %587 = vmatpush.msra.mxu0 %v516
    %588 = vmatpush.msra.mxu0 %v515
    %589 = vmatpush.msra.mxu0 %v514
    %590 = vmatpush.msra.mxu0 %v513
    %591 = vmatpush.msra.mxu0 %v512
    %592 = vmatmul.f32.gmra.mxu0 %v571
    %v593 = vpop.f32.mrf.mxu0
    %v594 = vadd.f32 %v520, %v593
    %595 = vmatmul.f32.gmra.mxu0 %v574
    %v596 = vpop.f32.mrf.mxu0
    %v597 = vadd.f32 %v520, %v596
    %598 = vdwg.mxu0
    %v599 = vtanh.pop %v594
    %v600 = vtanh.pop %v597
    %v602 = vperm.slane %v538, 0
    %v603 = vperm.slane %v538, 1
    %v607 = vsel %vm94, %v599, 0
    %v610 = vsel %vm94, %v600, 0
    %612 = vmatpush.msra.mxu0 0.0
    %613 = vmatpush.msra.mxu0 0.0
    %614 = vmatpush.msra.mxu0 0.0
    %615 = vmatpush.msra.mxu0 0.0
    %616 = vmatpush.msra.mxu0 0.0
    %617 = vmatpush.msra.mxu0 0.0
    %618 = vmatpush.msra.mxu0 0.0
    %619 = vmatpush.msra.mxu0 0.0
    %620 = vmatpush.msra.mxu0 %v535
    %621 = vmatpush.msra.mxu0 %v533
    %622 = vmatpush.msra.mxu0 %v531
    %623 = vmatpush.msra.mxu0 %v529
    %624 = vmatpush.msra.mxu0 %v527
    %625 = vmatpush.msra.mxu0 %v525
    %626 = vmatpush.msra.mxu0 %v523
    %627 = vmatpush.msra.mxu0 %v521
    %628 = vmatmul.f32.gmra.mxu0 %v607
    %v629 = vpop.f32.mrf.mxu0
    %v630 = vadd.f32 %v602, %v629
    %631 = vmatmul.f32.gmra.mxu0 %v610
    %v632 = vpop.f32.mrf.mxu0
    %v633 = vadd.f32 %v602, %v632
    %634 = vdwg.mxu0
    %635 = vmatpush.msra.mxu0 0.0
    %636 = vmatpush.msra.mxu0 0.0
    %637 = vmatpush.msra.mxu0 0.0
    %638 = vmatpush.msra.mxu0 0.0
    %639 = vmatpush.msra.mxu0 0.0
    %640 = vmatpush.msra.mxu0 0.0
    %641 = vmatpush.msra.mxu0 0.0
    %642 = vmatpush.msra.mxu0 0.0
    %643 = vmatpush.msra.mxu0 %v536
    %644 = vmatpush.msra.mxu0 %v534
    %645 = vmatpush.msra.mxu0 %v532
    %646 = vmatpush.msra.mxu0 %v530
    %647 = vmatpush.msra.mxu0 %v528
    %648 = vmatpush.msra.mxu0 %v526
    %649 = vmatpush.msra.mxu0 %v524
    %650 = vmatpush.msra.mxu0 %v522
    %651 = vmatmul.f32.gmra.mxu0 %v607
    %v652 = vpop.f32.mrf.mxu0
    %v653 = vadd.f32 %v603, %v652
    %654 = vmatmul.f32.gmra.mxu0 %v610
    %v655 = vpop.f32.mrf.mxu0
    %v656 = vadd.f32 %v603, %v655
    %657 = vdwg.mxu0
    %v658 = vmul.f32 %v653, 1.442695
    %v659 = vpow.pop %v658
    %v660 = vmul.f32 %v656, 1.442695
    %v661 = vpow.pop %v660
    %v662 = vmul.f32 %v346, %v659
    %v663 = vmul.f32 %v347, %v661
    %v664 = vadd.f32 %v630, %v662
    %v665 = vadd.f32 %v633, %v663
    %v666 = vadd.f32 %v350, %v496
    %v667 = vadd.f32 %v351, %v499
    %v668 = vadd.f32 %v666, %v653
    %v669 = vadd.f32 %v667, %v656
    %671 = vset.pattern.permute.xlu0 8
    %672 = vperm.xlu0 %671, %v668
    %v673 = vpop.permute.xlu0 %672
    %676 = vset.pattern.permute.xlu0 8
    %677 = vperm.xlu0 %676, %v669
    %v678 = vpop.permute.xlu0 %677
    %680 = vrot.lane.b32.xlu0 %v507, 8
    %v681 = vpop.permute.xlu0 %680
    %682 = vrot.lane.b32.xlu0 %v508, 8
    %v683 = vpop.permute.xlu0 %682
    %v686 = vsel %vm62, %v664, %v681
    %v687 = vsel %vm62, %v665, %v683
    %vm688 = vcmask 130048
    %v689 = vsel %vm688, %v686, %v673
    %v690 = vsel %vm688, %v687, %v678
    %691 = vst [vmem:[#allocation5] sm:$0xff] %v689
    %692 = vst [vmem:[#allocation5 + $0x8] sm:$0xff] %v690
    // Predicated region
    $region14: #{tpu_custom_call.1} parent=1 // pred_check
      _
    $region15: #{tpu_custom_call.1} parent=1 // pred_check_branch
      %694 = sbr.rel (0) target = $region17
    $region16: #{tpu_custom_call.1} parent=1 // pred_region
      %696 = vsyncadd [#allocation4], 0
      %s697 = sshll.u32 [#allocation5], 4
      %s698 = int_to_ptr.vmem [resolvable:$true] %s697
      %s699 = sshll.u32 %s2, 4
      %s700 = int_to_ptr.hbm [resolvable:$true] %s699
      %705 = dma.vmem_to_hbm [thread:$0]  %s698, 256, %s700, [#allocation4], 128, 128, 8
    $region17: #{tpu_custom_call.1} parent=1 // pred_fallthru
      _
    // Predicated region
    $region18: #{tpu_custom_call.1} parent=1 // pred_check
      _
    $region19: #{tpu_custom_call.1} parent=1 // pred_check_branch
      %707 = sbr.rel (0) target = $region21
    $region20: #{tpu_custom_call.1} parent=1 // pred_region
      %709 = dma.done [#allocation4], 256
    $region21: #{tpu_custom_call.1} parent=1 // pred_fallthru
      _
    %710 = vsyncpa [#allocation3], 1
    %711 = vsyncpa [#allocation4], 1

</llo_original>
